<compile_context>
chip_gen: v5e
topology: v5e:2x2
jax: 0.10.0
libtpu: 0.0.40
codegen_flags: <defaults>
</compile_context>

<pallas_src>
import jax
import jax.numpy as jnp
from jax.experimental import pallas as pl
from jax.experimental.pallas import tpu as pltpu


_LANE = 128
# Per-block VMEM budget. Input + output, each double-buffered => ~4x this in
# flight (32 MiB), comfortably under the 48 MiB scoped limit below on all of
# v5e / v6e (128 MiB physical VMEM) and v7x (64 MiB physical VMEM).
_TARGET_BLOCK_BYTES = 8 * 1024 * 1024
# Raw bytes per block on the ragged (1, n) path: a 1-row block is laid out in
# (8, 128) tiles with padded sublanes (~8x VMEM footprint), so keep it modest.
_UNALIGNED_BLOCK_BYTES = 1 * 1024 * 1024
_VMEM_LIMIT_BYTES = 48 * 1024 * 1024
# Below this many bytes, skip pallas_call entirely (plain XLA where is fused).
_SMALL_INPUT_BYTES = 256 * 1024
# Aim for at least this many grid steps (v7x megacore sharding) as long as each
# block stays at least _MIN_SPLIT_BLOCK_BYTES.
_MIN_GRID_BLOCKS = 8
_MIN_SPLIT_BLOCK_BYTES = 512 * 1024


def _cdiv(a: int, b: int) -> int:
    return -(-a // b)


def _make_kernel(beta: float):
    def kernel(x_ref, o_ref):
        x = x_ref[...]
        o_ref[...] = jnp.where(
            x >= jnp.asarray(1.0, x.dtype), x, jnp.asarray(beta, x.dtype)
        )

    return kernel


def _block_rows_for(rows: int, width: int, itemsize: int, min_sublane: int) -> int:
    """Pick a block row count: big blocks, but >= _MIN_GRID_BLOCKS steps when large."""
    row_bytes = width * itemsize
    target = (_TARGET_BLOCK_BYTES // row_bytes) // min_sublane * min_sublane
    target = max(min_sublane, target)

    # Cap so the 'parallel' grid axis has enough iterations to shard across both
    # v7x TensorCores — but never shrink a block below _MIN_SPLIT_BLOCK_BYTES.
    split = _cdiv(rows, _MIN_GRID_BLOCKS)
    split = _cdiv(split, min_sublane) * min_sublane
    if split * row_bytes >= _MIN_SPLIT_BLOCK_BYTES:
        target = min(target, split)

    # Never exceed the array; block_rows == rows is the (allowed) full-extent case.
    return max(1, min(target, rows))


def _beta_relu_rows(x2d: jax.Array, beta: float) -> jax.Array:
    """Pallas kernel over a (rows, width) slab, width a multiple of 128."""
    rows, width = x2d.shape
    dtype = x2d.dtype
    itemsize = jnp.dtype(dtype).itemsize
    # Sub-32-bit dtypes pack along sublanes: f32 -> 8, bf16 -> 16, int8/fp8 -> 32.
    min_sublane = 8 * max(1, 4 // itemsize)

    block_rows = _block_rows_for(rows, width, itemsize, min_sublane)
    grid = (_cdiv(rows, block_rows),)

    return pl.pallas_call(
        _make_kernel(beta),
        out_shape=jax.ShapeDtypeStruct((rows, width), dtype),
        grid_spec=pl.GridSpec(
            grid=grid,
            in_specs=[pl.BlockSpec((block_rows, width), lambda i: (i, 0))],
            out_specs=pl.BlockSpec((block_rows, width), lambda i: (i, 0)),
        ),
        compiler_params=pltpu.CompilerParams(
            dimension_semantics=("parallel",),
            vmem_limit_bytes=_VMEM_LIMIT_BYTES,
        ),
    )(x2d)


def _beta_relu_flat(flat: jax.Array, beta: float) -> jax.Array:
    """Ragged path (n not a multiple of 128): one masked pallas_call over (1, n).

    The last (partial) block's out-of-range lanes are never written (masked
    store), and the padded reads are harmless — still exactly 1 HBM read +
    1 HBM write, no slice / concatenate copies.
    """
    n = flat.shape[0]
    dtype = flat.dtype
    itemsize = jnp.dtype(dtype).itemsize

    max_cols = max(_LANE, (_UNALIGNED_BLOCK_BYTES // itemsize) // _LANE * _LANE)
    block_cols = min(max_cols, _cdiv(n, _LANE) * _LANE)
    grid = (_cdiv(n, block_cols),)

    out = pl.pallas_call(
        _make_kernel(beta),
        out_shape=jax.ShapeDtypeStruct((1, n), dtype),
        grid_spec=pl.GridSpec(
            grid=grid,
            in_specs=[pl.BlockSpec((1, block_cols), lambda i: (0, i))],
            out_specs=pl.BlockSpec((1, block_cols), lambda i: (0, i)),
        ),
        compiler_params=pltpu.CompilerParams(
            dimension_semantics=("parallel",),
            vmem_limit_bytes=_VMEM_LIMIT_BYTES,
        ),
    )(flat.reshape(1, n))
    return out.reshape(n)


def beta_relu(
    x: jax.Array, beta: float, *, min_pallas_bytes: int = _SMALL_INPUT_BYTES
) -> jax.Array:
    """Pallas TPU implementation of BetaReLU.forward: where(x >= 1.0, x, Beta)."""
    orig_shape = x.shape
    dtype = x.dtype
    n = x.size
    if n == 0:
        return x

    itemsize = jnp.dtype(dtype).itemsize
    if n * itemsize < min_pallas_bytes:
        # Tiny activation: pallas_call launch/pipeline overhead dominates; let
        # XLA fuse the elementwise select into neighbors instead.
        return jnp.where(x >= jnp.asarray(1.0, dtype), x, jnp.asarray(beta, dtype))

    flat = x.reshape(-1)

    if n % _LANE == 0:
        # Widest lane-dense width that exactly tiles the flat array (no copies).
        width = _LANE
        for cand in (4096, 2048, 1024, 512, 256):
            if n % cand == 0:
                width = cand
                break
        out = _beta_relu_rows(flat.reshape(n // width, width), beta)
    else:
        out = _beta_relu_flat(flat, beta)

    return out.reshape(orig_shape)


if __name__ == "__main__":
    Beta = 0.1
    k0, k1 = jax.random.split(jax.random.PRNGKey(0))

    # 1) canonical small NCHW activation (aligned path), forced through Pallas
    x1 = jax.random.normal(k0, (2, 4, 16, 16), dtype=jnp.float32) * 2.0
    y1 = beta_relu(x1, Beta, min_pallas_bytes=0)
    jax.block_until_ready(y1)
    ref1 = jnp.where(x1 >= 1.0, jnp.float32(0) + x1, jnp.float32(Beta))
    assert y1.shape == x1.shape and y1.dtype == x1.dtype
    assert jnp.allclose(y1, ref1), "aligned-path mismatch vs reference"

    # 2) unaligned total size -> single masked pallas_call (ragged last block)
    x2 = jax.random.normal(k1, (3, 5, 7, 11), dtype=jnp.float32) * 2.0
    y2 = beta_relu(x2, Beta, min_pallas_bytes=0)
    jax.block_until_ready(y2)
    ref2 = jnp.where(x2 >= 1.0, x2, jnp.float32(Beta))
    assert y2.shape == x2.shape and y2.dtype == x2.dtype
    assert jnp.allclose(y2, ref2), "ragged-path mismatch vs reference"

    # 3) default small-input short-circuit path (semantics identical)
    y3 = beta_relu(x1, Beta)
    jax.block_until_ready(y3)
    assert jnp.allclose(y3, ref1), "short-circuit path mismatch vs reference"

    print("KERNEL_OK")
</pallas_src>

<mosaic_0001>
module attributes {stable_mosaic.version = 11 : i64} {
  func.func @kernel(%arg0: i32, %arg1: memref<1x2048xf32, #tpu.memory_space<vmem>>, %arg2: memref<1x2048xf32, #tpu.memory_space<vmem>>) attributes {dimension_semantics = [#tpu.dimension_semantics<parallel>], iteration_bounds = array<i64: 1>, scalar_prefetch = 0 : i64, scratch_operands = 0 : i64, tpu.core_type = #tpu.core_type<tc>, window_params = [{transform_indices = @transform_0, window_bounds = array<i64: 1, 2048>}, {transform_indices = @transform_1, window_bounds = array<i64: 1, 2048>}]} {
    %c0 = arith.constant 0 : index
    %c0_0 = arith.constant 0 : index
    %0 = vector.load %arg1[%c0, %c0_0] : memref<1x2048xf32, #tpu.memory_space<vmem>>, vector<1x2048xf32>
    %cst = arith.constant 1.000000e+00 : f32
    %1 = vector.broadcast %cst : f32 to vector<1x2048xf32>
    %2 = arith.cmpf oge, %0, %1 : vector<1x2048xf32>
    %cst_1 = arith.constant 1.000000e-01 : f32
    %3 = vector.broadcast %cst_1 : f32 to vector<1x2048xf32>
    %4 = arith.select %2, %0, %3 : vector<1x2048xi1>, vector<1x2048xf32>
    %c0_2 = arith.constant 0 : index
    %c0_3 = arith.constant 0 : index
    %5 = vector.load %arg2[%c0_2, %c0_3] : memref<1x2048xf32, #tpu.memory_space<vmem>>, vector<1x2048xf32>
    tpu.vector_store %arg2[%c0_2, %c0_3], %4 {strides = array<i32>} : memref<1x2048xf32, #tpu.memory_space<vmem>>, vector<1x2048xf32>,
    return
  }
  func.func @transform_0(%arg0: i32) -> (i32, i32) {
    %c0_i32 = arith.constant 0 : i32
    %c0_i32_0 = arith.constant 0 : i32
    return %arg0, %c0_i32 : i32, i32
  }
  func.func @transform_1(%arg0: i32) -> (i32, i32) {
    %c0_i32 = arith.constant 0 : i32
    %c0_i32_0 = arith.constant 0 : i32
    return %arg0, %c0_i32 : i32, i32
  }
}

</mosaic_0001>

<llo_original>
// kernel: tpu_custom_call.1
$region0: #{tpu_custom_call.1}
  #allocation0 [shape = 'u32[]', space=smem, size = 0x4, offset = 0x4, fixed_abs, tag = 'smem constant byte address 0x4 - core index']
  #allocation1 [shape = 'u32[72,128]{1,0:T(1,128)}', space=vmem, size = 0x9000, scoped, tag = 'internal scratch']
  %s0 = inlined_call_operand.hbm [shape: f32[1,2048], index: 0, kind: input, shape index: {}]
  %s1 = inlined_call_operand.hbm [shape: f32[1,2048], index: 1, kind: output, shape index: {}]
  %s2 = sld [smem:[#allocation0]]
  $region18: #{tpu_custom_call.1} parent=0
    _
  %s4 = ssub.s32 1, %s2
  %s5 = scalar_select 0, %s4, %s2
  $region1: #{tpu_custom_call.1} parent=0
    #allocation2 [shape = 'u8[8192]{0}', space=vmem, size = 0x2000, scoped, tag = 'input window, operand 0, single buffered']
    #allocation3 [shape = 's32[1]{0}', space=sflag, size = 0x4, scoped, tag = 'scoped memory for tpu_custom_call.1']
    #allocation4 [shape = 's32[1]{0}', space=sflag, size = 0x4, scoped, tag = 'scoped memory for tpu_custom_call.1']
    #allocation5 [shape = 'u8[8192]{0}', space=vmem, size = 0x2000, scoped, tag = 'output window, operand 0, single buffered']
    %6 = vsyncpa [#allocation3], 0
    %7 = vsyncpa [#allocation4], 0
    // Predicated region
    $region2: #{tpu_custom_call.1} parent=1 // pred_check
      _
    $region3: #{tpu_custom_call.1} parent=1 // pred_check_branch
      %9 = sbr.rel (0) target = $region5
    $region4: #{tpu_custom_call.1} parent=1 // pred_region
      %11 = vsyncadd [#allocation3], 0
      %s13 = sshll.u32 %s0, 4
      %s14 = int_to_ptr.hbm [resolvable:$true] %s13
      %s15 = sshll.u32 [#allocation2], 4
      %s16 = int_to_ptr.vmem [resolvable:$true] %s15
      %18 = dma.hbm_to_vmem [thread:$0]  %s14, 256, %s16, [#allocation3]
    $region5: #{tpu_custom_call.1} parent=1 // pred_fallthru
      _
    // Predicated region
    $region6: #{tpu_custom_call.1} parent=1 // pred_check
      _
    $region7: #{tpu_custom_call.1} parent=1 // pred_check_branch
      %20 = sbr.rel (0) target = $region9
    $region8: #{tpu_custom_call.1} parent=1 // pred_region
      %22 = dma.done [#allocation3], 256
    $region9: #{tpu_custom_call.1} parent=1 // pred_fallthru
      _
    %v23 = vld [vmem:[#allocation2] sm:$0xff]
    %v24 = vld [vmem:[#allocation2 + $0x8] sm:$0xff]
    %vm25 = vcmp.ge.f32.partialorder %v23, 1.0
    %vm26 = vcmp.ge.f32.partialorder %v24, 1.0
    %v27 = vsel %vm25, %v23, 0.1
    %v28 = vsel %vm26, %v24, 0.1
    %29 = vst [vmem:[#allocation5] sm:$0xff] %v27
    %30 = vst [vmem:[#allocation5 + $0x8] sm:$0xff] %v28
    // Predicated region
    $region10: #{tpu_custom_call.1} parent=1 // pred_check
      _
    $region11: #{tpu_custom_call.1} parent=1 // pred_check_branch
      %32 = sbr.rel (0) target = $region13
    $region12: #{tpu_custom_call.1} parent=1 // pred_region
      %34 = vsyncadd [#allocation4], 0
      %s36 = sshll.u32 [#allocation5], 4
      %s37 = int_to_ptr.vmem [resolvable:$true] %s36
      %s38 = sshll.u32 %s1, 4
      %s39 = int_to_ptr.hbm [resolvable:$true] %s38
      %41 = dma.vmem_to_hbm [thread:$0]  %s37, 256, %s39, [#allocation4]
    $region13: #{tpu_custom_call.1} parent=1 // pred_fallthru
      _
    // Predicated region
    $region14: #{tpu_custom_call.1} parent=1 // pred_check
      _
    $region15: #{tpu_custom_call.1} parent=1 // pred_check_branch
      %43 = sbr.rel (0) target = $region17
    $region16: #{tpu_custom_call.1} parent=1 // pred_region
      %45 = dma.done [#allocation4], 256
    $region17: #{tpu_custom_call.1} parent=1 // pred_fallthru
      _
    %46 = vsyncpa [#allocation3], 1
    %47 = vsyncpa [#allocation4], 1

</llo_original>
